<compile_context>
chip_gen: v7x
topology: tpu7x:2x2x1
jax: 0.10.0
libtpu: 0.0.40
codegen_flags: <defaults>
</compile_context>

<pallas_src>
import jax
import jax.numpy as jnp
from jax.experimental import pallas as pl
from jax.experimental.pallas import tpu as pltpu

# torchvision grayscale coefficients
_RW, _GW, _BW = 0.2989, 0.587, 0.114

_LANE = 128        # lane width of the flattened layout
_TR_TARGET = 2048  # 128-lane rows per tile: 3 MiB (in) + 3 MiB (out) per block in fp32


def _saturation_kernel(factor_ref, img_ref, out_ref):
    # factor_ref: (1,) float32 in SMEM
    # img_ref / out_ref: (1, 3, TR, 128) blocks in VMEM
    f = factor_ref[0]
    x = img_ref[0].astype(jnp.float32)               # (3, TR, 128)
    gray = _RW * x[0] + _GW * x[1] + _BW * x[2]      # (TR, 128)
    blended = gray[None, :, :] + f * (x - gray[None, :, :])
    out_ref[0] = jnp.clip(blended, 0.0, 1.0).astype(out_ref.dtype)


def adjust_saturation_pallas(image, factor):
    """image: (N, 3, H, W) float32/bfloat16, factor: python float or 0-d array."""
    N, C, H, W = image.shape
    assert C == 3, "adjust_saturation requires 3-channel RGB input"
    dtype = image.dtype

    # ---- lane-dense flatten: (N, 3, H, W) -> (N, 3, R_pad, 128) ----
    P = H * W
    R = pl.cdiv(P, _LANE)
    if R <= _TR_TARGET:
        tr = R                       # single spatial block; full-extent dim, any size is legal
        r_pad = R
    else:
        tr = _TR_TARGET              # multiple of 8, lane dim = 128
        r_pad = pl.cdiv(R, tr) * tr
    p_pad = r_pad * _LANE

    flat = image.reshape(N, C, P)    # contiguous -> free reshape
    if p_pad != P:
        flat = jnp.pad(flat, ((0, 0), (0, 0), (0, p_pad - P)))
    tiled = flat.reshape(N, C, r_pad, _LANE)

    factor_arr = jnp.asarray(factor, dtype=jnp.float32).reshape((1,))

    out_tiled = pl.pallas_call(
        _saturation_kernel,
        out_shape=jax.ShapeDtypeStruct((N, C, r_pad, _LANE), dtype),
        grid_spec=pl.GridSpec(
            grid=(N, r_pad // tr),
            in_specs=[
                pl.BlockSpec(memory_space=pltpu.MemorySpace.SMEM),            # factor
                pl.BlockSpec((1, C, tr, _LANE), lambda n, t: (n, 0, t, 0)),   # image tiles
            ],
            out_specs=pl.BlockSpec((1, C, tr, _LANE), lambda n, t: (n, 0, t, 0)),
        ),
        compiler_params=pltpu.CompilerParams(
            dimension_semantics=("parallel", "parallel"),   # batch x spatial, both TCs on v7x
            vmem_limit_bytes=32 * 1024 * 1024,              # <=12 MiB live; fits v5e/v6e/v7x
        ),
    )(factor_arr, tiled)

    out_flat = out_tiled.reshape(N, C, p_pad)
    if p_pad != P:
        out_flat = out_flat[:, :, :P]
    return out_flat.reshape(N, C, H, W)


class Saturation:
    """JAX/Pallas port of videoseal Saturation augmentation."""

    def __init__(self, min_factor=None, max_factor=None):
        self.min_factor = min_factor
        self.max_factor = max_factor

    def get_random_factor(self, key):
        if self.min_factor is None or self.max_factor is None:
            raise ValueError("Factor range must be specified")
        u = jax.random.uniform(key, ())
        return u * (self.max_factor - self.min_factor) + self.min_factor

    def __call__(self, image, mask, factor=None, key=None):
        if factor is None:
            factor = self.get_random_factor(key)
        image = adjust_saturation_pallas(image, factor)
        return image, mask


def _reference(image, factor):
    gray = (_RW * image[:, 0] + _GW * image[:, 1] + _BW * image[:, 2])[:, None]
    return jnp.clip(gray + factor * (image - gray), 0.0, 1.0)


if __name__ == "__main__":
    key = jax.random.PRNGKey(0)
    k_img, k_mask, k_fac, k_img2 = jax.random.split(key, 4)

    # --- main check: fixed factor, aligned shapes ---
    N, C, H, W = 2, 3, 16, 16  # NCHW, RGB
    image = jax.random.uniform(k_img, (N, C, H, W), dtype=jnp.float32)
    mask = (jax.random.uniform(k_mask, (N, 1, H, W)) > 0.5).astype(jnp.float32)

    aug = Saturation(min_factor=0.5, max_factor=1.5)

    factor = 1.3
    out_image, out_mask = aug(image, mask, factor=factor)
    out_image = jax.block_until_ready(out_image)
    ref = _reference(image, factor)
    assert jnp.allclose(out_image, ref, atol=1e-5), "mismatch vs reference (fixed factor)"
    assert out_mask.shape == mask.shape

    # --- random-factor path ---
    out_image_r, _ = aug(image, mask, key=k_fac)
    out_image_r = jax.block_until_ready(out_image_r)
    f_r = aug.get_random_factor(k_fac)
    assert jnp.allclose(out_image_r, _reference(image, f_r), atol=1e-5), "mismatch (random factor)"

    # --- padding path: H*W not a multiple of 128 ---
    image_odd = jax.random.uniform(k_img2, (1, 3, 5, 7), dtype=jnp.float32)
    out_odd = jax.block_until_ready(adjust_saturation_pallas(image_odd, 0.75))
    assert jnp.allclose(out_odd, _reference(image_odd, 0.75), atol=1e-5), "mismatch (padded shape)"

    # --- bf16 I/O path (compute stays f32 inside the kernel) ---
    image_bf16 = image.astype(jnp.bfloat16)
    out_bf16 = jax.block_until_ready(adjust_saturation_pallas(image_bf16, factor))
    assert out_bf16.dtype == jnp.bfloat16
    assert jnp.allclose(out_bf16.astype(jnp.float32),
                        _reference(image_bf16.astype(jnp.float32), factor),
                        atol=1e-2), "mismatch (bf16)"

    print("KERNEL_OK")
</pallas_src>

<mosaic_0001>
module attributes {stable_mosaic.version = 11 : i64} {
  func.func @_saturation_kernel(%arg0: i32, %arg1: i32, %arg2: memref<1xf32, #tpu.memory_space<smem>>, %arg3: memref<1x3x2x128xf32, #tpu.memory_space<vmem>>, %arg4: memref<1x3x2x128xf32, #tpu.memory_space<vmem>>) attributes {dimension_semantics = [#tpu.dimension_semantics<parallel>, #tpu.dimension_semantics<parallel>], iteration_bounds = array<i64: 2, 1>, scalar_prefetch = 0 : i64, scratch_operands = 0 : i64, tpu.core_type = #tpu.core_type<tc>, window_params = [{transform_indices = @transform_0, window_bounds = array<i64: 1>}, {transform_indices = @transform_1, window_bounds = array<i64: 1, 3, 2, 128>}, {transform_indices = @transform_2, window_bounds = array<i64: 1, 3, 2, 128>}]} {
    %c0 = arith.constant 0 : index
    %0 = memref.load %arg2[%c0] : memref<1xf32, #tpu.memory_space<smem>>
    %c0_0 = arith.constant 0 : index
    %c0_1 = arith.constant 0 : index
    %c0_2 = arith.constant 0 : index
    %c0_3 = arith.constant 0 : index
    %1 = vector.load %arg3[%c0_0, %c0_1, %c0_2, %c0_3] : memref<1x3x2x128xf32, #tpu.memory_space<vmem>>, vector<1x3x2x128xf32>
    %2 = vector.shape_cast %1 : vector<1x3x2x128xf32> to vector<3x2x128xf32>
    %3 = vector.extract_strided_slice %2 {offsets = [0, 0, 0], sizes = [1, 2, 128], strides = [1, 1, 1]} : vector<3x2x128xf32> to vector<1x2x128xf32>
    %4 = vector.shape_cast %3 : vector<1x2x128xf32> to vector<2x128xf32>
    %cst = arith.constant 2.989000e-01 : f32
    %5 = vector.broadcast %cst : f32 to vector<2x128xf32>
    %6 = arith.mulf %5, %4 : vector<2x128xf32>
    %7 = vector.extract_strided_slice %2 {offsets = [1, 0, 0], sizes = [1, 2, 128], strides = [1, 1, 1]} : vector<3x2x128xf32> to vector<1x2x128xf32>
    %8 = vector.shape_cast %7 : vector<1x2x128xf32> to vector<2x128xf32>
    %cst_4 = arith.constant 5.870000e-01 : f32
    %9 = vector.broadcast %cst_4 : f32 to vector<2x128xf32>
    %10 = arith.mulf %9, %8 : vector<2x128xf32>
    %11 = arith.addf %6, %10 : vector<2x128xf32>
    %12 = vector.extract_strided_slice %2 {offsets = [2, 0, 0], sizes = [1, 2, 128], strides = [1, 1, 1]} : vector<3x2x128xf32> to vector<1x2x128xf32>
    %13 = vector.shape_cast %12 : vector<1x2x128xf32> to vector<2x128xf32>
    %cst_5 = arith.constant 1.140000e-01 : f32
    %14 = vector.broadcast %cst_5 : f32 to vector<2x128xf32>
    %15 = arith.mulf %14, %13 : vector<2x128xf32>
    %16 = arith.addf %11, %15 : vector<2x128xf32>
    %17 = vector.shape_cast %16 : vector<2x128xf32> to vector<1x2x128xf32>
    %18 = vector.shape_cast %16 : vector<2x128xf32> to vector<1x2x128xf32>
    %19 = vector.broadcast %18 : vector<1x2x128xf32> to vector<3x2x128xf32>
    %20 = arith.subf %2, %19 : vector<3x2x128xf32>
    %21 = vector.broadcast %0 : f32 to vector<3x2x128xf32>
    %22 = arith.mulf %21, %20 : vector<3x2x128xf32>
    %23 = vector.broadcast %17 : vector<1x2x128xf32> to vector<3x2x128xf32>
    %24 = arith.addf %23, %22 : vector<3x2x128xf32>
    %cst_6 = arith.constant 0.000000e+00 : f32
    %cst_7 = arith.constant 1.000000e+00 : f32
    %25 = vector.broadcast %cst_6 : f32 to vector<3x2x128xf32>
    %26 = arith.maximumf %25, %24 : vector<3x2x128xf32>
    %27 = vector.broadcast %cst_7 : f32 to vector<3x2x128xf32>
    %28 = arith.minimumf %27, %26 : vector<3x2x128xf32>
    %c0_8 = arith.constant 0 : index
    %c0_9 = arith.constant 0 : index
    %c0_10 = arith.constant 0 : index
    %c0_11 = arith.constant 0 : index
    %29 = vector.load %arg4[%c0_8, %c0_9, %c0_10, %c0_11] : memref<1x3x2x128xf32, #tpu.memory_space<vmem>>, vector<1x3x2x128xf32>
    %30 = vector.shape_cast %29 : vector<1x3x2x128xf32> to vector<3x2x128xf32>
    %31 = vector.shape_cast %28 : vector<3x2x128xf32> to vector<1x3x2x128xf32>
    tpu.vector_store %arg4[%c0_8, %c0_9, %c0_10, %c0_11], %31 {strides = array<i32>} : memref<1x3x2x128xf32, #tpu.memory_space<vmem>>, vector<1x3x2x128xf32>,
    return
  }
  func.func @transform_0(%arg0: i32, %arg1: i32) -> i32 {
    %c0_i32 = arith.constant 0 : i32
    %c0_i32_0 = arith.constant 0 : i32
    return %c0_i32 : i32
  }
  func.func @transform_1(%arg0: i32, %arg1: i32) -> (i32, i32, i32, i32) {
    %c0_i32 = arith.constant 0 : i32
    %c0_i32_0 = arith.constant 0 : i32
    %c0_i32_1 = arith.constant 0 : i32
    return %arg0, %c0_i32, %arg1, %c0_i32_0 : i32, i32, i32, i32
  }
  func.func @transform_2(%arg0: i32, %arg1: i32) -> (i32, i32, i32, i32) {
    %c0_i32 = arith.constant 0 : i32
    %c0_i32_0 = arith.constant 0 : i32
    %c0_i32_1 = arith.constant 0 : i32
    return %arg0, %c0_i32, %arg1, %c0_i32_0 : i32, i32, i32, i32
  }
}

</mosaic_0001>

<llo_original>
// kernel: tpu_custom_call.1
$region0: #{tpu_custom_call.1}
  #allocation0 [shape = 'u32[]', space=smem, size = 0x4, offset = 0x4, fixed_abs, tag = 'smem constant byte address 0x4 - core index']
  #allocation1 [shape = 'u32[144,128]{1,0:T(1,128)}', space=vmem, size = 0x12000, scoped, tag = 'internal scratch']
  #allocation2 [shape = 'f32[1]{0:T(128)S(6)}', space=smem, size = 0x200, scoped, tag = 'scoped memory for tpu_custom_call.1']
  %s0 = inlined_call_operand.<no memory space> [shape: f32[1], index: 0, kind: input, shape index: {}]
  %s1 = inlined_call_operand.hbm [shape: f32[2,3,2,128], index: 1, kind: input, shape index: {}]
  %s2 = inlined_call_operand.hbm [shape: f32[2,3,2,128], index: 2, kind: output, shape index: {}]
  %s3 = sld [smem:[#allocation0]]
  $region45: #{tpu_custom_call.1} parent=0
    _
  %s5 = ssub.s32 1, %s3
  %s6 = scalar_select 0, %s5, %s3
  %7 = sst [smem:[#allocation2]] %s0
  $region1: #{tpu_custom_call.1} parent=0
    #allocation3 [shape = 'u8[6144]{0}', space=vmem, size = 0x1800, scoped, tag = 'input window, operand 1']
    #allocation4 [shape = 's32[2]{0}', space=sflag, size = 0x8, scoped, tag = 'scoped memory for tpu_custom_call.1']
    #allocation5 [shape = 's32[2]{0}', space=sflag, size = 0x8, scoped, tag = 'scoped memory for tpu_custom_call.1']
    #allocation6 [shape = 'u8[6144]{0}', space=vmem, size = 0x1800, scoped, tag = 'output window, operand 0']
    %8 = vsyncpa [#allocation4], 0
    %s9 = scalar_lea.sflag [#allocation4], 1
    %10 = vsyncpa %s9, 0
    %11 = vsyncpa [#allocation5], 0
    %s12 = scalar_lea.sflag [#allocation5], 1
    %13 = vsyncpa %s12, 0
    loop: start=0, step=1, limit=4
    $region2: #{tpu_custom_call.1} parent=1 // loop_pre_header
      _
    $region3: #{tpu_custom_call.1} parent=1 // loop_header
      %s15 = sphi 0, %s19
      %p16 = scmp.ge.s32.totalorder %s15, 4
      %s22 = sphi 0, %s34
      %s23 = sphi 0, %s30
      %s24 = sphi 0, %s22
      %s25 = sphi 0, %s23
      %s26 = sphi 0, %s24
      %s27 = sphi 0, %s25
      %s35 = sphi 0, %s35
      %s37 = sphi 0, %s35
      %s38 = sphi 0, %s37
      %s52 = sphi 0, %s38
      %s60 = sphi 0, %s62
      %s63 = sphi 0, %s60
      %s64 = sphi 0, %s63
      %s80 = sphi 0, %s64
      %s88 = sphi 0, %s90
      %s91 = sphi 0, %s88
      %s92 = sphi 0, %s91
      %s108 = sphi 0, %s92
    $region4: #{tpu_custom_call.1} parent=1 // loop_header_branch
      %18 = sbr.rel (%p16) target = $region8
    $region5: #{tpu_custom_call.1} parent=1 // loop_body
      %s20 = ssub.s32 %s15, 1
      %s21 = ssub.s32 %s15, 2
      %s28 = sadd.s32 1, %s23
      %p29 = scmp.ge.s32.totalorder %s28, 1
      %s30 = scalar_select %p29, 0, %s28
      %s31 = sadd.s32 1, %s22
      %s32 = scalar_select %p29, %s31, %s22
      %p33 = scmp.ge.s32.totalorder %s32, 2
      %s34 = scalar_select %p33, 0, %s32
      %s36 = sadd.s32 %s35, 1
      %p39 = scmp.eq.s32.totalorder %s15, 1
      %p40 = scmp.ne.s32.totalorder %s35, %s37
      %p41 = scmp.eq.s32.totalorder %s15, 0
      %p42 = por %p40, %p41
      %p43 = scmp.ne.s32.totalorder %s35, %s37
      %p44 = scmp.eq.s32.totalorder %s20, 1
      %p45 = por %p43, %p44
      %p46 = scmp.ne.s32.totalorder %s37, %s38
      %p47 = scmp.eq.s32.totalorder %s20, 0
      %p48 = por %p46, %p47
      %p49 = scmp.ne.s32.totalorder %s37, %s38
      %p50 = scmp.eq.s32.totalorder %s21, 1
      %p51 = por %p49, %p50
      %p53 = scmp.ne.s32.totalorder %s38, %s52
      %p54 = scmp.eq.s32.totalorder %s21, 0
      %p55 = por %p53, %p54
      %s56 = ssub.s32 %s22, %s34
      %s57 = ssub.s32 %s23, %s30
      %s58 = sor.u32 %s56, %s57
      %p59 = scmp.eq.s32.totalorder %s58, 0
      %s61 = sadd.s32 %s60, 1
      %s62 = scalar_select %p59, %s60, %s61
      %p65 = pneg %p59
      %p66 = scmp.eq.s32.totalorder %s15, 1
      %p67 = por %p65, %p66
      %p68 = scmp.ne.s32.totalorder %s60, %s63
      %p69 = scmp.eq.s32.totalorder %s15, 0
      %p70 = por %p68, %p69
      %p71 = scmp.ne.s32.totalorder %s60, %s63
      %p72 = scmp.eq.s32.totalorder %s20, 1
      %p73 = por %p71, %p72
      %p74 = scmp.ne.s32.totalorder %s63, %s64
      %p75 = scmp.eq.s32.totalorder %s20, 0
      %p76 = por %p74, %p75
      %p77 = scmp.ne.s32.totalorder %s63, %s64
      %p78 = scmp.eq.s32.totalorder %s21, 1
      %p79 = por %p77, %p78
      %p81 = scmp.ne.s32.totalorder %s64, %s80
      %p82 = scmp.eq.s32.totalorder %s21, 0
      %p83 = por %p81, %p82
      %s84 = ssub.s32 %s22, %s34
      %s85 = ssub.s32 %s23, %s30
      %s86 = sor.u32 %s84, %s85
      %p87 = scmp.eq.s32.totalorder %s86, 0
      %s89 = sadd.s32 %s88, 1
      %s90 = scalar_select %p87, %s88, %s89
      %p93 = pneg %p87
      %p94 = scmp.eq.s32.totalorder %s15, 1
      %p95 = por %p93, %p94
      %p96 = scmp.ne.s32.totalorder %s88, %s91
      %p97 = scmp.eq.s32.totalorder %s15, 0
      %p98 = por %p96, %p97
      %p99 = scmp.ne.s32.totalorder %s88, %s91
      %p100 = scmp.eq.s32.totalorder %s20, 1
      %p101 = por %p99, %p100
      %p102 = scmp.ne.s32.totalorder %s91, %s92
      %p103 = scmp.eq.s32.totalorder %s20, 0
      %p104 = por %p102, %p103
      %p105 = scmp.ne.s32.totalorder %s91, %s92
      %p106 = scmp.eq.s32.totalorder %s21, 1
      %p107 = por %p105, %p106
      %p109 = scmp.ne.s32.totalorder %s92, %s108
      %p110 = scmp.eq.s32.totalorder %s21, 0
      %p111 = por %p109, %p110
      %p112 = scmp.le.s32.totalorder 1, %s15
      %p113 = scmp.lt.s32.totalorder %s15, 3
      %p114 = pnand %p112, %p113
      %p115 = pneg %p114
      // Predicated region
      $region9: #{tpu_custom_call.1} parent=5 // pred_check
        _
      $region10: #{tpu_custom_call.1} parent=5 // pred_check_branch
        %117 = sbr.rel (%p114) target = $region12
      $region11: #{tpu_custom_call.1} parent=5 // pred_region
        %s118 = ssub.s32 %s15, 1
        // Predicated region
        $region13: #{tpu_custom_call.1} parent=11 // pred_check
          %p119 = pneg %p48
        $region14: #{tpu_custom_call.1} parent=11 // pred_check_branch
          %121 = sbr.rel (%p119) target = $region16
        $region15: #{tpu_custom_call.1} parent=11 // pred_region
          _
        $region16: #{tpu_custom_call.1} parent=11 // pred_fallthru
          _
      $region12: #{tpu_custom_call.1} parent=5 // pred_fallthru
        _
      %p122 = scmp.lt.s32.totalorder %s15, 2
      // Predicated region
      $region17: #{tpu_custom_call.1} parent=5 // pred_check
        %p123 = pneg %p122
      $region18: #{tpu_custom_call.1} parent=5 // pred_check_branch
        %125 = sbr.rel (%p123) target = $region20
      $region19: #{tpu_custom_call.1} parent=5 // pred_region
        // Predicated region
        $region21: #{tpu_custom_call.1} parent=19 // pred_check
          %p126 = pneg %p70
        $region22: #{tpu_custom_call.1} parent=19 // pred_check_branch
          %128 = sbr.rel (%p126) target = $region24
        $region23: #{tpu_custom_call.1} parent=19 // pred_region
          %s129 = sand.u32 %s60, 1
          %s130 = scalar_lea.sflag [#allocation4], %s129
          %s131 = sand.u32 %s60, 1
          %s132 = smul.addr %s131, 6
          %s133 = scalar_lea.vmem [#allocation3], %s132
          %s135 = ssub.s32 96, 96
          %136 = vsyncadd %s130, %s135
          %s137 = smul.addr %s22, 3
          %s138 = sadd.s32 %s23, %s137
          %s139 = smul.addr %s138, 32
          %s140 = scalar_lea.hbm %s1, %s139
          %s141 = sshll.u32 %s133, 4
          %s142 = int_to_ptr.vmem [resolvable:$true] %s141
          %147 = dma.hbm_to_vmem [thread:$0]  %s140, 96, %s142, %s130, 32, 32, 2
        $region24: #{tpu_custom_call.1} parent=19 // pred_fallthru
          _
      $region20: #{tpu_custom_call.1} parent=5 // pred_fallthru
        _
      %p148 = scmp.le.s32.totalorder 1, %s15
      %p149 = scmp.lt.s32.totalorder %s15, 3
      %p150 = pnand %p148, %p149
      %p151 = pneg %p150
      // Predicated region
      $region25: #{tpu_custom_call.1} parent=5 // pred_check
        _
      $region26: #{tpu_custom_call.1} parent=5 // pred_check_branch
        %153 = sbr.rel (%p150) target = $region28
      $region27: #{tpu_custom_call.1} parent=5 // pred_region
        %s154 = ssub.s32 %s15, 1
        %s155 = sand.u32 %s63, 1
        %s156 = scalar_lea.sflag [#allocation4], %s155
        %s157 = sand.u32 %s63, 1
        %s158 = smul.addr %s157, 6
        %s159 = scalar_lea.vmem [#allocation3], %s158
        // Predicated region
        $region29: #{tpu_custom_call.1} parent=27 // pred_check
          %p160 = pneg %p76
        $region30: #{tpu_custom_call.1} parent=27 // pred_check_branch
          %162 = sbr.rel (%p160) target = $region32
        $region31: #{tpu_custom_call.1} parent=27 // pred_region
          %163 = dma.done %s156, 96
        $region32: #{tpu_custom_call.1} parent=27 // pred_fallthru
          _
        %p164 = pneg %p48
        %p165 = pneg %p45
        %s166 = sand.u32 %s63, 1
        %s167 = scalar_lea.sflag [#allocation4], %s166
        %s168 = sand.u32 %s63, 1
        %s169 = smul.addr %s168, 6
        %s170 = scalar_lea.vmem [#allocation3], %s169
        %p171 = pneg %p76
        %p172 = pneg %p73
        %p173 = pneg %p104
        %p174 = pneg %p101
        %s175 = sand.u32 %s91, 1
        %s176 = scalar_lea.sflag [#allocation5], %s175
        %s177 = sand.u32 %s91, 1
        %s178 = smul.addr %s177, 6
        %s179 = scalar_lea.vmem [#allocation6], %s178
        %s180 = sld [smem:[#allocation2]]
        %v181 = vld [vmem:[%s159] sm:$0x3]
        %v182 = vld [vmem:[%s159 + $0x2] sm:$0x3]
        %v183 = vld [vmem:[%s159 + $0x4] sm:$0x3]
        %v184 = vmul.f32 %v181, 0.2989
        %v185 = vmul.f32 %v182, 0.587
        %v186 = vadd.f32 %v184, %v185
        %v187 = vmul.f32 %v183, 0.114
        %v188 = vadd.f32 %v186, %v187
        %v189 = vsub.f32 %v181, %v188
        %v190 = vsub.f32 %v182, %v188
        %v191 = vsub.f32 %v183, %v188
        %v192 = vstv %s180
        %v193 = vmul.f32 %v192, %v189
        %v194 = vmul.f32 %v192, %v190
        %v195 = vmul.f32 %v192, %v191
        %v196 = vadd.f32 %v188, %v193
        %v197 = vadd.f32 %v188, %v194
        %v198 = vadd.f32 %v188, %v195
        %v199 = vmax.f32 %v196, 0.0
        %v200 = vmax.f32 %v197, 0.0
        %v201 = vmax.f32 %v198, 0.0
        %v202 = vmin.f32 %v199, 1.0
        %v203 = vmin.f32 %v200, 1.0
        %v204 = vmin.f32 %v201, 1.0
        %205 = vst [vmem:[%s179] sm:$0x3] %v202
        %206 = vst [vmem:[%s179 + $0x2] sm:$0x3] %v203
        %207 = vst [vmem:[%s179 + $0x4] sm:$0x3] %v204
        %s208 = sand.u32 %s91, 1
        %s209 = scalar_lea.sflag [#allocation5], %s208
        %s210 = sand.u32 %s91, 1
        %s211 = smul.addr %s210, 6
        %s212 = scalar_lea.vmem [#allocation6], %s211
        // Predicated region
        $region33: #{tpu_custom_call.1} parent=27 // pred_check
          %p213 = pneg %p101
        $region34: #{tpu_custom_call.1} parent=27 // pred_check_branch
          %215 = sbr.rel (%p213) target = $region36
        $region35: #{tpu_custom_call.1} parent=27 // pred_region
          %s217 = ssub.s32 96, 96
          %218 = vsyncadd %s209, %s217
          %s219 = smul.addr %s24, 3
          %s220 = sadd.s32 %s25, %s219
          %s221 = smul.addr %s220, 32
          %s222 = scalar_lea.hbm %s2, %s221
          %s223 = sshll.u32 %s212, 4
          %s224 = int_to_ptr.vmem [resolvable:$true] %s223
          %229 = dma.vmem_to_hbm [thread:$0]  %s224, 96, %s222, %s209, 32, 32, 2
        $region36: #{tpu_custom_call.1} parent=27 // pred_fallthru
          _
      $region28: #{tpu_custom_call.1} parent=5 // pred_fallthru
        _
      %p230 = scmp.le.s32.totalorder 2, %s15
      // Predicated region
      $region37: #{tpu_custom_call.1} parent=5 // pred_check
        %p231 = pneg %p230
      $region38: #{tpu_custom_call.1} parent=5 // pred_check_branch
        %233 = sbr.rel (%p231) target = $region40
      $region39: #{tpu_custom_call.1} parent=5 // pred_region
        %s234 = ssub.s32 %s15, 2
        // Predicated region
        $region41: #{tpu_custom_call.1} parent=39 // pred_check
          %p235 = pneg %p107
        $region42: #{tpu_custom_call.1} parent=39 // pred_check_branch
          %237 = sbr.rel (%p235) target = $region44
        $region43: #{tpu_custom_call.1} parent=39 // pred_region
          %s238 = sand.u32 %s92, 1
          %s239 = scalar_lea.sflag [#allocation5], %s238
          %s240 = sand.u32 %s92, 1
          %s241 = smul.addr %s240, 6
          %s242 = scalar_lea.vmem [#allocation6], %s241
          %243 = dma.done %s239, 96
        $region44: #{tpu_custom_call.1} parent=39 // pred_fallthru
          _
      $region40: #{tpu_custom_call.1} parent=5 // pred_fallthru
        _
    $region6: #{tpu_custom_call.1} parent=1 // loop_footer
      %s19 = sadd.s32 1, %s15
    $region7: #{tpu_custom_call.1} parent=1 // loop_footer_branch
      %14 = sbr.rel target = $region3
    $region8: #{tpu_custom_call.1} parent=1 // loop_exit
      _
    %244 = vsyncpa [#allocation4], 1
    %s245 = scalar_lea.sflag [#allocation4], 1
    %246 = vsyncpa %s245, 1
    %247 = vsyncpa [#allocation5], 1
    %s248 = scalar_lea.sflag [#allocation5], 1
    %249 = vsyncpa %s248, 1

</llo_original>
